<compile_context>
chip_gen: v7x
topology: tpu7x:2x2x1
jax: 0.10.0
libtpu: 0.0.40
codegen_flags: <defaults>
</compile_context>

<pallas_src>
import functools

import jax
import jax.numpy as jnp
from jax.experimental import pallas as pl
from jax.experimental.pallas import tpu as pltpu


def _soft_ce_kernel(*refs, n_total, tm, has_weights):
    """One grid step: a (tm, C) row tile -> one (1, 8, 128) partial-sum block."""
    if has_weights:
        x_ref, t_ref, w_ref, o_ref = refs
    else:
        x_ref, t_ref, o_ref = refs
        w_ref = None

    x = x_ref[...].astype(jnp.float32)
    t = t_ref[...].astype(jnp.float32)

    # log-sum-exp pieces of log_softmax along the lane axis.
    m = jnp.max(x, axis=-1, keepdims=True)                               # (tm, 1)
    shifted = x - m
    lse = jnp.log(jnp.sum(jnp.exp(shifted), axis=-1, keepdims=True))     # (tm, 1)

    # tw = target * class_weights  (or just target when unweighted).
    if has_weights:
        tw = t * w_ref[...].astype(jnp.float32)      # (1, C) broadcasts over rows
    else:
        tw = t

    # row_loss = sum_c(-tw * (shifted - lse)) = lse*sum_c(tw) - sum_c(tw*shifted)
    s_tw = jnp.sum(tw, axis=-1, keepdims=True)                           # (tm, 1)
    s_tws = jnp.sum(tw * shifted, axis=-1, keepdims=True)                # (tm, 1)
    row_loss = lse * s_tw - s_tws                                        # (tm, 1)

    if n_total % tm != 0:
        # Mask rows of the (out-of-bounds padded) remainder tile.
        row_ids = pl.program_id(0) * tm + jax.lax.broadcasted_iota(
            jnp.int32, (tm, 1), 0)
        row_loss = jnp.where(row_ids < n_total, row_loss, 0.0)

    partial = jnp.sum(row_loss)
    # Lane-dense (8,128) block per tile; wrapper reads element [0, 0].
    o_ref[...] = jnp.full((1, 8, 128), partial, dtype=jnp.float32)


def _vmem_budget_bytes():
    """Per-generation VMEM budget for the pipelined input tiles."""
    try:
        kind = jax.devices()[0].device_kind.lower()
    except Exception:
        kind = ""
    if "v2" in kind or "v3" in kind:
        return 12 * 1024 * 1024
    if "v4" in kind or "v5" in kind or "v6" in kind:
        return 96 * 1024 * 1024          # 128 MiB physical VMEM per TensorCore
    return 48 * 1024 * 1024              # v7x (64 MiB physical) / safe default


def _pick_tm(n, c, x_dtype, t_dtype, budget_bytes):
    """Largest row tile whose double-buffered x+target tiles fit the budget."""
    x_b = jnp.dtype(x_dtype).itemsize
    t_b = jnp.dtype(t_dtype).itemsize
    sub = 8 if min(x_b, t_b) >= 4 else 16          # f32 sublane 8, bf16 packed 16
    per_row = 2 * c * (x_b + t_b)                  # 2 pipeline buffers, x + target
    tm = int((budget_bytes * 7 // 8) // max(per_row, 1))   # ~12.5% headroom
    tm = max((tm // sub) * sub, sub)
    n_pad = -(-n // sub) * sub
    return min(tm, n_pad)


def soft_target_cross_entropy(x, target, weights=None, *, tm=None):
    """loss = mean_rows sum_c(-target * (weights *) log_softmax(x)) over last axis."""
    assert x.shape == target.shape and x.ndim >= 2
    c = x.shape[-1]
    x2 = x.reshape(-1, c)
    t2 = target.reshape(-1, c)
    n = x2.shape[0]

    budget = _vmem_budget_bytes()
    if tm is None:
        tm = _pick_tm(n, c, x2.dtype, t2.dtype, budget)
    num_tiles = pl.cdiv(n, tm)

    has_weights = weights is not None
    kernel = functools.partial(
        _soft_ce_kernel, n_total=n, tm=tm, has_weights=has_weights)

    in_specs = [
        pl.BlockSpec((tm, c), lambda i: (i, 0)),    # x row tile
        pl.BlockSpec((tm, c), lambda i: (i, 0)),    # target row tile
    ]
    args = [x2, t2]
    if has_weights:
        w = jnp.asarray(weights, dtype=jnp.float32).reshape(1, c)
        in_specs.append(pl.BlockSpec((1, c), lambda i: (0, 0)))   # resident weights
        args.append(w)

    partials = pl.pallas_call(
        kernel,
        out_shape=jax.ShapeDtypeStruct((num_tiles, 8, 128), jnp.float32),
        grid_spec=pltpu.PrefetchScalarGridSpec(
            num_scalar_prefetch=0,
            grid=(num_tiles,),
            in_specs=in_specs,
            out_specs=pl.BlockSpec((1, 8, 128), lambda i: (i, 0, 0)),
        ),
        compiler_params=pltpu.CompilerParams(
            dimension_semantics=("parallel",),     # independent per-tile partials
            vmem_limit_bytes=budget,
        ),
    )(*args)

    # Tiny tree-style final reduce in XLA (also better summation order than a
    # serial scalar accumulator).
    return jnp.sum(partials[:, 0, 0]) / jnp.float32(n)


def _reference(x, target, weights=None):
    xf = x.astype(jnp.float32)
    tf = target.astype(jnp.float32)
    log_probs = jax.nn.log_softmax(xf, axis=-1)
    if weights is not None:
        log_probs = log_probs * jnp.asarray(weights, jnp.float32)[None, :]
    return jnp.mean(jnp.sum(-tf * log_probs, axis=-1))


if __name__ == "__main__":
    key = jax.random.PRNGKey(0)
    k1, k2, k3, k4, k5 = jax.random.split(key, 5)

    # f32 path, small shapes consistent with the module.
    N, C = 8, 32
    x = jax.random.normal(k1, (N, C), dtype=jnp.float32)
    target = jax.nn.softmax(jax.random.normal(k2, (N, C), dtype=jnp.float32), axis=-1)
    weights = 0.5 + jax.random.uniform(k3, (C,), dtype=jnp.float32)

    loss_none = soft_target_cross_entropy(x, target, None)
    jax.block_until_ready(loss_none)
    ref_none = _reference(x, target, None)
    assert jnp.allclose(loss_none, ref_none, atol=1e-5, rtol=1e-5), (loss_none, ref_none)

    loss_w = soft_target_cross_entropy(x, target, weights)
    jax.block_until_ready(loss_w)
    ref_w = _reference(x, target, weights)
    assert jnp.allclose(loss_w, ref_w, atol=1e-5, rtol=1e-5), (loss_w, ref_w)

    # bf16 inputs (half the HBM traffic; kernel casts to f32 internally) with a
    # row count that is NOT a multiple of the tile -> exercises remainder mask.
    N2, C2 = 24, 32
    xb = jax.random.normal(k4, (N2, C2), dtype=jnp.float32).astype(jnp.bfloat16)
    tb = jax.nn.softmax(
        jax.random.normal(k5, (N2, C2), dtype=jnp.float32), axis=-1
    ).astype(jnp.bfloat16)
    loss_b = soft_target_cross_entropy(xb, tb, None, tm=16)
    jax.block_until_ready(loss_b)
    ref_b = _reference(xb, tb, None)
    assert jnp.allclose(loss_b, ref_b, atol=1e-4, rtol=1e-4), (loss_b, ref_b)

    print("KERNEL_OK")
</pallas_src>

<mosaic_0001>
module attributes {stable_mosaic.version = 11 : i64} {
  func.func @_soft_ce_kernel(%arg0: i32, %arg1: memref<8x32xf32, #tpu.memory_space<vmem>>, %arg2: memref<8x32xf32, #tpu.memory_space<vmem>>, %arg3: memref<1x8x128xf32, #tpu.memory_space<vmem>>) attributes {dimension_semantics = [#tpu.dimension_semantics<parallel>], iteration_bounds = array<i64: 1>, scalar_prefetch = 0 : i64, scratch_operands = 0 : i64, tpu.core_type = #tpu.core_type<tc>, window_params = [{transform_indices = @transform_0, window_bounds = array<i64: 8, 32>}, {transform_indices = @transform_1, window_bounds = array<i64: 8, 32>}, {transform_indices = @transform_2, window_bounds = array<i64: 1, 8, 128>}]} {
    %c0 = arith.constant 0 : index
    %c0_0 = arith.constant 0 : index
    %0 = vector.load %arg1[%c0, %c0_0] : memref<8x32xf32, #tpu.memory_space<vmem>>, vector<8x32xf32>
    %c0_1 = arith.constant 0 : index
    %c0_2 = arith.constant 0 : index
    %1 = vector.load %arg2[%c0_1, %c0_2] : memref<8x32xf32, #tpu.memory_space<vmem>>, vector<8x32xf32>
    %cst = arith.constant dense<0xFF800000> : vector<8xf32>
    %2 = vector.multi_reduction <maximumf>, %0, %cst [1] : vector<8x32xf32> to vector<8xf32>
    %3 = vector.shape_cast %2 : vector<8xf32> to vector<8x1xf32>
    %4 = vector.broadcast %3 : vector<8x1xf32> to vector<8x32xf32>
    %5 = arith.subf %0, %4 : vector<8x32xf32>
    %6 = math.exp %5 : vector<8x32xf32>
    %cst_3 = arith.constant dense<0.000000e+00> : vector<8xf32>
    %7 = vector.multi_reduction <add>, %6, %cst_3 [1] : vector<8x32xf32> to vector<8xf32>
    %8 = vector.shape_cast %7 : vector<8xf32> to vector<8x1xf32>
    %9 = math.log %8 : vector<8x1xf32>
    %cst_4 = arith.constant dense<0.000000e+00> : vector<8xf32>
    %10 = vector.multi_reduction <add>, %1, %cst_4 [1] : vector<8x32xf32> to vector<8xf32>
    %11 = vector.shape_cast %10 : vector<8xf32> to vector<8x1xf32>
    %12 = arith.mulf %1, %5 : vector<8x32xf32>
    %cst_5 = arith.constant dense<0.000000e+00> : vector<8xf32>
    %13 = vector.multi_reduction <add>, %12, %cst_5 [1] : vector<8x32xf32> to vector<8xf32>
    %14 = vector.shape_cast %13 : vector<8xf32> to vector<8x1xf32>
    %15 = arith.mulf %9, %11 : vector<8x1xf32>
    %16 = arith.subf %15, %14 : vector<8x1xf32>
    %17 = vector.shape_cast %16 : vector<8x1xf32> to vector<1x8x1xf32>
    %cst_6 = arith.constant dense<0.000000e+00> : vector<1xf32>
    %18 = vector.multi_reduction <add>, %17, %cst_6 [1, 2] : vector<1x8x1xf32> to vector<1xf32>
    %19 = vector.shape_cast %18 : vector<1xf32> to vector<1x1x1xf32>
    %20 = vector.extract %19[0, 0, 0] : f32 from vector<1x1x1xf32>
    %21 = vector.broadcast %20 : f32 to vector<1x8x128xf32>
    %c0_7 = arith.constant 0 : index
    %c0_8 = arith.constant 0 : index
    %c0_9 = arith.constant 0 : index
    %22 = vector.load %arg3[%c0_7, %c0_8, %c0_9] : memref<1x8x128xf32, #tpu.memory_space<vmem>>, vector<1x8x128xf32>
    tpu.vector_store %arg3[%c0_7, %c0_8, %c0_9], %21 {strides = array<i32>} : memref<1x8x128xf32, #tpu.memory_space<vmem>>, vector<1x8x128xf32>,
    return
  }
  func.func @transform_0(%arg0: i32) -> (i32, i32) {
    %c0_i32 = arith.constant 0 : i32
    %c0_i32_0 = arith.constant 0 : i32
    return %arg0, %c0_i32 : i32, i32
  }
  func.func @transform_1(%arg0: i32) -> (i32, i32) {
    %c0_i32 = arith.constant 0 : i32
    %c0_i32_0 = arith.constant 0 : i32
    return %arg0, %c0_i32 : i32, i32
  }
  func.func @transform_2(%arg0: i32) -> (i32, i32, i32) {
    %c0_i32 = arith.constant 0 : i32
    %c0_i32_0 = arith.constant 0 : i32
    %c0_i32_1 = arith.constant 0 : i32
    return %arg0, %c0_i32, %c0_i32_0 : i32, i32, i32
  }
}

</mosaic_0001>

<llo_original>
// kernel: tpu_custom_call.1
$region0: #{tpu_custom_call.1}
  #allocation0 [shape = 'u32[]', space=smem, size = 0x4, offset = 0x4, fixed_abs, tag = 'smem constant byte address 0x4 - core index']
  #allocation1 [shape = 'u32[144,128]{1,0:T(1,128)}', space=vmem, size = 0x12000, scoped, tag = 'internal scratch']
  %s0 = inlined_call_operand.hbm [shape: f32[8,32], index: 0, kind: input, shape index: {}]
  %s1 = inlined_call_operand.hbm [shape: f32[8,32], index: 1, kind: input, shape index: {}]
  %s2 = inlined_call_operand.hbm [shape: f32[1,8,128], index: 2, kind: output, shape index: {}]
  %s3 = sld [smem:[#allocation0]]
  $region26: #{tpu_custom_call.1} parent=0
    _
  %s5 = ssub.s32 1, %s3
  %s6 = scalar_select 0, %s5, %s3
  $region1: #{tpu_custom_call.1} parent=0
    #allocation2 [shape = 'u8[4096]{0}', space=vmem, size = 0x1000, scoped, tag = 'input window, operand 0, single buffered']
    #allocation3 [shape = 's32[1]{0}', space=sflag, size = 0x4, scoped, tag = 'scoped memory for tpu_custom_call.1']
    #allocation4 [shape = 's32[1]{0}', space=sflag, size = 0x4, scoped, tag = 'scoped memory for tpu_custom_call.1']
    #allocation5 [shape = 'u8[4096]{0}', space=vmem, size = 0x1000, scoped, tag = 'input window, operand 1, single buffered']
    #allocation6 [shape = 's32[1]{0}', space=sflag, size = 0x4, scoped, tag = 'scoped memory for tpu_custom_call.1']
    #allocation7 [shape = 'u8[4096]{0}', space=vmem, size = 0x1000, scoped, tag = 'output window, operand 0, single buffered']
    %7 = vsyncpa [#allocation3], 0
    %8 = vsyncpa [#allocation6], 0
    %9 = vsyncpa [#allocation4], 0
    // Predicated region
    $region2: #{tpu_custom_call.1} parent=1 // pred_check
      _
    $region3: #{tpu_custom_call.1} parent=1 // pred_check_branch
      %11 = sbr.rel (0) target = $region5
    $region4: #{tpu_custom_call.1} parent=1 // pred_region
      %s13 = ssub.s32 128, 128
      %14 = vsyncadd [#allocation3], %s13
      %s16 = sshll.u32 [#allocation2], 4
      %s17 = int_to_ptr.vmem [resolvable:$true] %s16
      %19 = dma.hbm_to_vmem [thread:$0]  %s0, 128, %s17, [#allocation3]
    $region5: #{tpu_custom_call.1} parent=1 // pred_fallthru
      _
    // Predicated region
    $region6: #{tpu_custom_call.1} parent=1 // pred_check
      _
    $region7: #{tpu_custom_call.1} parent=1 // pred_check_branch
      %21 = sbr.rel (0) target = $region9
    $region8: #{tpu_custom_call.1} parent=1 // pred_region
      %s23 = ssub.s32 128, 128
      %24 = vsyncadd [#allocation6], %s23
      %s26 = sshll.u32 [#allocation5], 4
      %s27 = int_to_ptr.vmem [resolvable:$true] %s26
      %29 = dma.hbm_to_vmem [thread:$0]  %s1, 128, %s27, [#allocation6]
    $region9: #{tpu_custom_call.1} parent=1 // pred_fallthru
      _
    // Predicated region
    $region10: #{tpu_custom_call.1} parent=1 // pred_check
      _
    $region11: #{tpu_custom_call.1} parent=1 // pred_check_branch
      %31 = sbr.rel (0) target = $region13
    $region12: #{tpu_custom_call.1} parent=1 // pred_region
      %32 = dma.done [#allocation3], 128
    $region13: #{tpu_custom_call.1} parent=1 // pred_fallthru
      _
    // Predicated region
    $region14: #{tpu_custom_call.1} parent=1 // pred_check
      _
    $region15: #{tpu_custom_call.1} parent=1 // pred_check_branch
      %34 = sbr.rel (0) target = $region17
    $region16: #{tpu_custom_call.1} parent=1 // pred_region
      %35 = dma.done [#allocation6], 128
    $region17: #{tpu_custom_call.1} parent=1 // pred_fallthru
      _
    %v36 = vld [vmem:[#allocation2] sm:$0xff]
    %v37 = vld [vmem:[#allocation5] sm:$0xff]
    %vm38 = vcmask 261120
    %v39 = vsel %vm38, %v36, -inf
    %40 = vmax.xlane.f32.xlu0 %v39
    %v41 = vpop.xlane.xlu0 %40
    %v42 = vsub.f32 %v36, %v41
    %v43 = vmul.f32 %v42, 1.442695
    %v44 = vpow.pop %v43
    %v45 = vsel %vm38, %v44, 0.0
    %46 = vadd.xlane.f32.xlu0 %v45
    %v47 = vpop.xlane.xlu0 %46
    %v48 = vlog2.pop %v47
    %v49 = vmul.f32 %v48, 0.6931472
    %v50 = vsel %vm38, %v37, 0.0
    %51 = vadd.xlane.f32.xlu0 %v50
    %v52 = vpop.xlane.xlu0 %51
    %v53 = vmul.f32 %v37, %v42
    %v54 = vsel %vm38, %v53, 0.0
    %55 = vadd.xlane.f32.xlu0 %v54
    %v56 = vpop.xlane.xlu0 %55
    %v57 = vmul.f32 %v49, %v52
    %v58 = vsub.f32 %v57, %v56
    %vm59 = vcmask 7168
    %v60 = vsel %vm59, %v58, 0.0
    %61 = vadd.xlane.f32.xlu0 %v60
    %v62 = vpop.xlane.xlu0 %61
    %v63 = vrot.slane %v62, 4
    %v64 = vadd.f32 %v62, %v63
    %v65 = vrot.slane %v64, 2
    %v66 = vadd.f32 %v64, %v65
    %v67 = vrot.slane %v66, 1
    %v68 = vadd.f32 %v66, %v67
    %s69 = vtos %v68
    %v70 = vstv %s69
    %71 = vst [vmem:[#allocation7] sm:$0xff] %v70
    // Predicated region
    $region18: #{tpu_custom_call.1} parent=1 // pred_check
      _
    $region19: #{tpu_custom_call.1} parent=1 // pred_check_branch
      %73 = sbr.rel (0) target = $region21
    $region20: #{tpu_custom_call.1} parent=1 // pred_region
      %s75 = ssub.s32 128, 128
      %76 = vsyncadd [#allocation4], %s75
      %s78 = sshll.u32 [#allocation7], 4
      %s79 = int_to_ptr.vmem [resolvable:$true] %s78
      %81 = dma.vmem_to_hbm [thread:$0]  %s79, 128, %s2, [#allocation4]
    $region21: #{tpu_custom_call.1} parent=1 // pred_fallthru
      _
    // Predicated region
    $region22: #{tpu_custom_call.1} parent=1 // pred_check
      _
    $region23: #{tpu_custom_call.1} parent=1 // pred_check_branch
      %83 = sbr.rel (0) target = $region25
    $region24: #{tpu_custom_call.1} parent=1 // pred_region
      %84 = dma.done [#allocation4], 128
    $region25: #{tpu_custom_call.1} parent=1 // pred_fallthru
      _
    %85 = vsyncpa [#allocation3], 1
    %86 = vsyncpa [#allocation6], 1
    %87 = vsyncpa [#allocation4], 1

</llo_original>
